<compile_context>
chip_gen: v7x
topology: tpu7x:2x2x1
jax: 0.10.0
libtpu: 0.0.40
codegen_flags: <defaults>
</compile_context>

<pallas_src>
import jax
import jax.numpy as jnp
from jax import lax
from jax.experimental import pallas as pl
from jax.experimental.pallas import tpu as pltpu

# ----------------------------- configuration ------------------------------ #
HORIZON      = 8           # predictive horizon T (== f32 sublane count)
T_PAD        = 16          # time rows padded to a sublane multiple (unmasked stores)
DIM_STATE    = 3           # (x, y, theta)
DIM_CONTROL  = 2           # (v, omega)
NUM_LIN_VEL  = 8
NUM_ANG_VEL  = 16
K            = NUM_LIN_VEL * NUM_ANG_VEL          # 128 rollouts = one lane row
DELTA_T      = 0.1

# scalar control / acceleration limits (dynamics.min_action / max_action / a_lim)
U_MIN_V, U_MAX_V = 0.0, 1.0
U_MIN_W, U_MAX_W = -1.0, 1.0
A_LIM_V, A_LIM_W = 0.5, 1.0

# deterministic synthetic objective parameters (Objectives is external code)
GOAL_X, GOAL_Y = 2.0, 1.5
W_POS, W_CTRL, W_TERM = 1.0, 0.1, 5.0

assert NUM_ANG_VEL & (NUM_ANG_VEL - 1) == 0, "lane->(v,w) decode uses shift/mask"
_ANG_SHIFT = NUM_ANG_VEL.bit_length() - 1
_ANG_MASK  = NUM_ANG_VEL - 1


# ------------------------------ Pallas kernel ------------------------------ #
def _cumsum_rows(a):
    """Inclusive prefix sum along axis 0 (sublanes), log-depth Hillis-Steele."""
    n = a.shape[0]
    y = a
    shift = 1
    while shift < n:
        top = jnp.zeros((shift,) + a.shape[1:], a.dtype)
        y = y + jnp.concatenate([top, y[: n - shift]], axis=0)
        shift *= 2
    return y


def dwa_kernel(state_ref, prev_ref, seq_ref, misc_ref, opt_ref):
    """Fully fused DWA forward.

    state_ref : (3,) SMEM f32  (x0, y0, theta0)
    prev_ref  : (2,) SMEM f32  previous action (v0, omega0)
    seq_ref   : (3, T_PAD, K) VMEM  rollout states (component, padded time, sample)
    misc_ref  : (8, K) VMEM  rows = [cost, weights, v, w, 0, 0, 0, 0]
    opt_ref   : (T_PAD, 8) VMEM  lanes = [x*, y*, th*, v*, w*, 0, 0, 0]
    """
    x0  = state_ref[0]
    y0  = state_ref[1]
    th0 = state_ref[2]
    v0  = prev_ref[0]
    w0  = prev_ref[1]
    dt = jnp.float32(DELTA_T)

    # ---- dynamic window (scalar ALU; moved out of the wrapper) ----
    v_min = jnp.maximum(jnp.float32(U_MIN_V), v0 - jnp.float32(A_LIM_V) * dt)
    v_max = jnp.minimum(jnp.float32(U_MAX_V), v0 + jnp.float32(A_LIM_V) * dt)
    o_min = jnp.maximum(jnp.float32(U_MIN_W), w0 - jnp.float32(A_LIM_W) * dt)
    o_max = jnp.minimum(jnp.float32(U_MAX_W), w0 + jnp.float32(A_LIM_W) * dt)

    # ---- action grid (torch.cartesian_prod: v slow, omega fast), K on lanes ----
    lane  = lax.broadcasted_iota(jnp.int32, (1, K), 1)             # 0..127
    v_idx = jnp.right_shift(lane, _ANG_SHIFT).astype(jnp.float32)   # lane // 16
    o_idx = jnp.bitwise_and(lane, _ANG_MASK).astype(jnp.float32)    # lane %  16
    v = v_min + (v_max - v_min) * v_idx * jnp.float32(1.0 / (NUM_LIN_VEL - 1))   # (1,K)
    w = o_min + (o_max - o_min) * o_idx * jnp.float32(1.0 / (NUM_ANG_VEL - 1))   # (1,K)

    # ---- time-vectorized unicycle rollout (time on sublanes) ----
    t_stage = lax.broadcasted_iota(jnp.int32, (HORIZON, K), 0).astype(jnp.float32)  # 0..7
    t_pad   = lax.broadcasted_iota(jnp.int32, (T_PAD, K), 0).astype(jnp.float32)    # 0..15
    wdt = w * dt                                  # (1,K)
    vdt = v * dt                                  # (1,K)
    th_stage = th0 + wdt * t_stage                # theta at t = 0..7   (8,K)
    c = jnp.cos(th_stage)                         # one EUP pass each over a full tile
    s = jnp.sin(th_stage)
    dx = vdt * c                                  # per-step increments (8,K)
    dy = vdt * s
    zero_row = jnp.zeros((1, K), jnp.float32)
    pad_rows = jnp.zeros((T_PAD - HORIZON - 1, K), jnp.float32)
    X  = x0 + jnp.concatenate([zero_row, _cumsum_rows(dx), pad_rows], axis=0)   # (16,K)
    Y  = y0 + jnp.concatenate([zero_row, _cumsum_rows(dy), pad_rows], axis=0)   # (16,K)
    TH = th0 + wdt * t_pad                                                       # (16,K)

    # lane-dense, 8-aligned, unmasked full-width stores
    seq_ref[0] = X
    seq_ref[1] = Y
    seq_ref[2] = TH

    # ---- cost: stage (t=0..T-1, matches the PyTorch loop) + terminal (t=T) ----
    gx = jnp.float32(GOAL_X)
    gy = jnp.float32(GOAL_Y)
    dxs = X[:HORIZON] - gx
    dys = Y[:HORIZON] - gy
    stage_pos = jnp.sum(dxs * dxs + dys * dys, axis=0, keepdims=True)   # (1,K)
    ctrl = v * v + w * w                                                # hoisted, x HORIZON
    dxT = X[HORIZON:HORIZON + 1] - gx
    dyT = Y[HORIZON:HORIZON + 1] - gy
    cost = (jnp.float32(W_POS) * stage_pos
            + jnp.float32(HORIZON * W_CTRL) * ctrl
            + jnp.float32(W_TERM) * (dxT * dxT + dyT * dyT))            # (1,K)

    # ---- softmax(-cost) over the K lanes (reuse the lane-min as softmax max) ----
    m = jnp.min(cost, axis=1, keepdims=True)          # (1,1): min cost == max(-cost)
    e = jnp.exp(m - cost)                             # (1,K)
    z = jnp.sum(e, axis=1, keepdims=True)             # (1,1)
    weights = e * pl.reciprocal(z, approx=True)       # divide -> EUP reciprocal

    # ---- fused winner selection (argmin + gathers, all in-kernel) ----
    lane_f = lane.astype(jnp.float32)
    idx_masked = jnp.where(cost == m, lane_f, jnp.float32(K))
    min_idx = jnp.min(idx_masked, axis=1, keepdims=True)     # (1,1) first-argmin index
    winner = lane_f == min_idx                               # (1,K) one-hot mask

    # single-vreg misc slab: one unmasked store + one writeback DMA
    misc = jnp.concatenate(
        [cost, weights, v, w, jnp.zeros((4, K), jnp.float32)], axis=0)   # (8,K)
    misc_ref[...] = misc

    # lane-masked select + lane reduce -> winning trajectory / action
    x_opt  = jnp.sum(jnp.where(winner, X,  0.0), axis=1, keepdims=True)  # (16,1)
    y_opt  = jnp.sum(jnp.where(winner, Y,  0.0), axis=1, keepdims=True)
    th_opt = jnp.sum(jnp.where(winner, TH, 0.0), axis=1, keepdims=True)
    v_opt  = jnp.sum(jnp.where(winner, v,  0.0), axis=1, keepdims=True)  # (1,1)
    w_opt  = jnp.sum(jnp.where(winner, w,  0.0), axis=1, keepdims=True)
    opt = jnp.concatenate(
        [x_opt, y_opt, th_opt,
         jnp.broadcast_to(v_opt, (T_PAD, 1)),
         jnp.broadcast_to(w_opt, (T_PAD, 1)),
         jnp.zeros((T_PAD, 3), jnp.float32)],
        axis=1)                                                          # (16,8)
    opt_ref[...] = opt


def _dwa_pallas(state, previous_action):
    """state (3,) f32, previous_action (2,) f32 -> (seq, misc, opt) slabs."""
    return pl.pallas_call(
        dwa_kernel,
        out_shape=(
            jax.ShapeDtypeStruct((DIM_STATE, T_PAD, K), jnp.float32),  # seq
            jax.ShapeDtypeStruct((8, K), jnp.float32),                 # misc
            jax.ShapeDtypeStruct((T_PAD, 8), jnp.float32),             # opt
        ),
        in_specs=[
            pl.BlockSpec(memory_space=pltpu.MemorySpace.SMEM),
            pl.BlockSpec(memory_space=pltpu.MemorySpace.SMEM),
        ],
        out_specs=(
            pl.BlockSpec(memory_space=pltpu.MemorySpace.VMEM),
            pl.BlockSpec(memory_space=pltpu.MemorySpace.VMEM),
            pl.BlockSpec(memory_space=pltpu.MemorySpace.VMEM),
        ),
    )(state, previous_action)


# ------------------------------- DWA wrapper ------------------------------- #
@jax.jit
def dwa_forward(state, previous_action):
    """Mirror of DWA.forward. state: (3,) f32, previous_action: (2,) f32.

    Returns:
      optimal_action_seq (1, 2)
      optimal_state_seq  (1, T+1, 3)
      state_seq_batch    (3, T+1, K)   -- kernel-native layout (component, time, sample)
      weights            (K,)          -- softmax(-cost)
      cost_batch         (K,)
    Only static slices remain in the wrapper; argmin / gathers / the layout-hostile
    (K, T+1, 3) transpose are gone from the hot path.
    """
    seq, misc, opt = _dwa_pallas(state.astype(jnp.float32),
                                 previous_action.astype(jnp.float32))
    optimal_action_seq = opt[0:1, 3:5]                         # (1, 2)
    optimal_state_seq  = opt[:HORIZON + 1, 0:3][None]          # (1, T+1, 3)
    state_seq_batch    = seq[:, :HORIZON + 1, :]               # (3, T+1, K) kernel-native
    weights            = misc[1]                               # (K,)
    cost_batch         = misc[0]                               # (K,)
    return optimal_action_seq, optimal_state_seq, state_seq_batch, weights, cost_batch


def state_seq_batch_to_torch_layout(seq_native):
    """(3, T+1, K) -> (K, T+1, 3). Only call at the true PyTorch boundary."""
    return jnp.transpose(seq_native, (2, 1, 0))


# --------------------------- pure-JAX reference ---------------------------- #
def _dwa_reference(state, previous_action):
    """Straight jnp re-implementation of the same synthetic DWA forward."""
    v0, w0 = previous_action[0], previous_action[1]
    v_min = jnp.maximum(U_MIN_V, v0 - A_LIM_V * DELTA_T)
    v_max = jnp.minimum(U_MAX_V, v0 + A_LIM_V * DELTA_T)
    o_min = jnp.maximum(U_MIN_W, w0 - A_LIM_W * DELTA_T)
    o_max = jnp.minimum(U_MAX_W, w0 + A_LIM_W * DELTA_T)
    vs = v_min + (v_max - v_min) * jnp.arange(NUM_LIN_VEL, dtype=jnp.float32) / (NUM_LIN_VEL - 1)
    ws = o_min + (o_max - o_min) * jnp.arange(NUM_ANG_VEL, dtype=jnp.float32) / (NUM_ANG_VEL - 1)
    v = jnp.repeat(vs, NUM_ANG_VEL)     # v slow (cartesian_prod order)
    w = jnp.tile(ws, NUM_LIN_VEL)       # omega fast
    t = jnp.arange(HORIZON, dtype=jnp.float32)[:, None]
    th_stage = state[2] + w[None, :] * DELTA_T * t
    dx = v[None, :] * DELTA_T * jnp.cos(th_stage)
    dy = v[None, :] * DELTA_T * jnp.sin(th_stage)
    X = state[0] + jnp.concatenate([jnp.zeros((1, K)), jnp.cumsum(dx, axis=0)], axis=0)
    Y = state[1] + jnp.concatenate([jnp.zeros((1, K)), jnp.cumsum(dy, axis=0)], axis=0)
    TH = state[2] + w[None, :] * DELTA_T * jnp.arange(HORIZON + 1, dtype=jnp.float32)[:, None]
    stage = (W_POS * jnp.sum((X[:HORIZON] - GOAL_X) ** 2 + (Y[:HORIZON] - GOAL_Y) ** 2, axis=0)
             + HORIZON * W_CTRL * (v * v + w * w))
    cost = stage + W_TERM * ((X[HORIZON] - GOAL_X) ** 2 + (Y[HORIZON] - GOAL_Y) ** 2)
    weights = jax.nn.softmax(-cost)
    seq_native = jnp.stack([X, Y, TH], axis=0)   # (3, T+1, K)
    return seq_native, cost, weights, v, w


# TODO(synk): reference-path sub-goal selection (_select_sub_goal) is data-dependent
# boolean masking + argmin over a ragged external path; reference_path is None in this
# setup (matching forward()), so it stays out of the kernel.

# ----------------------------------- main ---------------------------------- #
if __name__ == "__main__":
    key = jax.random.PRNGKey(0)
    # current robot state (x, y, theta)
    state = jax.random.normal(key, (DIM_STATE,), dtype=jnp.float32)
    # previous action sequence is zeros at init -> first action is (0, 0)
    previous_action = jnp.zeros((DIM_CONTROL,), dtype=jnp.float32)

    opt_act, opt_seq, seq_native, weights, cost = dwa_forward(state, previous_action)
    jax.block_until_ready((opt_act, opt_seq, seq_native, weights, cost))

    # shapes
    assert opt_act.shape == (1, DIM_CONTROL)
    assert opt_seq.shape == (1, HORIZON + 1, DIM_STATE)
    assert seq_native.shape == (DIM_STATE, HORIZON + 1, K)
    assert weights.shape == (K,)
    assert cost.shape == (K,)
    assert bool(jnp.isfinite(weights).all()) and bool(jnp.isfinite(cost).all())

    # numerics vs. pure-JAX reference of the same synthetic objective
    ref_seq, ref_cost, ref_w, ref_v, ref_om = _dwa_reference(state, previous_action)
    assert bool(jnp.allclose(seq_native, ref_seq, rtol=1e-4, atol=1e-4))
    assert bool(jnp.allclose(cost, ref_cost, rtol=1e-4, atol=1e-4))
    assert bool(jnp.allclose(weights, ref_w, rtol=1e-2, atol=5e-3))  # approx reciprocal

    # fused in-kernel winner selection consistency (against the kernel's own outputs)
    idx = int(jnp.argmin(cost))
    assert bool(jnp.allclose(opt_seq[0], seq_native[:, :, idx].T, rtol=1e-5, atol=1e-5))
    assert bool(jnp.allclose(opt_act[0],
                             jnp.stack([ref_v[idx], ref_om[idx]]), rtol=1e-4, atol=1e-4))

    # boundary-only relayout helper (not part of the hot path)
    seq_torch = state_seq_batch_to_torch_layout(seq_native)
    assert seq_torch.shape == (K, HORIZON + 1, DIM_STATE)

    print("KERNEL_OK")
</pallas_src>

<mosaic_0001>
module attributes {stable_mosaic.version = 11 : i64} {
  func.func @dwa_kernel(%arg0: memref<3xf32, #tpu.memory_space<smem>>, %arg1: memref<2xf32, #tpu.memory_space<smem>>, %arg2: memref<3x16x128xf32, #tpu.memory_space<vmem>>, %arg3: memref<8x128xf32, #tpu.memory_space<vmem>>, %arg4: memref<16x8xf32, #tpu.memory_space<vmem>>) attributes {dimension_semantics = [], scalar_prefetch = 0 : i64, scratch_operands = 0 : i64, tpu.core_type = #tpu.core_type<tc>} {
    %c0 = arith.constant 0 : index
    %0 = memref.load %arg0[%c0] : memref<3xf32, #tpu.memory_space<smem>>
    %c1 = arith.constant 1 : index
    %1 = memref.load %arg0[%c1] : memref<3xf32, #tpu.memory_space<smem>>
    %c2 = arith.constant 2 : index
    %2 = memref.load %arg0[%c2] : memref<3xf32, #tpu.memory_space<smem>>
    %c0_0 = arith.constant 0 : index
    %3 = memref.load %arg1[%c0_0] : memref<2xf32, #tpu.memory_space<smem>>
    %c1_1 = arith.constant 1 : index
    %4 = memref.load %arg1[%c1_1] : memref<2xf32, #tpu.memory_space<smem>>
    %cst = arith.constant 5.000000e-01 : f32
    %cst_2 = arith.constant 1.000000e-01 : f32
    %5 = arith.mulf %cst, %cst_2 : f32
    %6 = arith.subf %3, %5 : f32
    %cst_3 = arith.constant 0.000000e+00 : f32
    %7 = arith.maximumf %cst_3, %6 : f32
    %cst_4 = arith.constant 5.000000e-01 : f32
    %cst_5 = arith.constant 1.000000e-01 : f32
    %8 = arith.mulf %cst_4, %cst_5 : f32
    %9 = arith.addf %3, %8 : f32
    %cst_6 = arith.constant 1.000000e+00 : f32
    %10 = arith.minimumf %cst_6, %9 : f32
    %cst_7 = arith.constant 1.000000e+00 : f32
    %cst_8 = arith.constant 1.000000e-01 : f32
    %11 = arith.mulf %cst_7, %cst_8 : f32
    %12 = arith.subf %4, %11 : f32
    %cst_9 = arith.constant -1.000000e+00 : f32
    %13 = arith.maximumf %cst_9, %12 : f32
    %cst_10 = arith.constant 1.000000e+00 : f32
    %cst_11 = arith.constant 1.000000e-01 : f32
    %14 = arith.mulf %cst_10, %cst_11 : f32
    %15 = arith.addf %4, %14 : f32
    %cst_12 = arith.constant 1.000000e+00 : f32
    %16 = arith.minimumf %cst_12, %15 : f32
    %17 = tpu.iota {dimensions = array<i32: 1>} : vector<1x128xi32>
    %c4_i32 = arith.constant 4 : i32
    %18 = vector.broadcast %c4_i32 : i32 to vector<1x128xi32>
    %19 = arith.shrsi %17, %18 : vector<1x128xi32>
    %20 = arith.sitofp %19 : vector<1x128xi32> to vector<1x128xf32>
    %c15_i32 = arith.constant 15 : i32
    %21 = vector.broadcast %c15_i32 : i32 to vector<1x128xi32>
    %22 = arith.andi %17, %21 : vector<1x128xi32>
    %23 = arith.sitofp %22 : vector<1x128xi32> to vector<1x128xf32>
    %24 = arith.subf %10, %7 : f32
    %25 = vector.broadcast %24 : f32 to vector<1x128xf32>
    %26 = arith.mulf %25, %20 : vector<1x128xf32>
    %cst_13 = arith.constant 0.142857149 : f32
    %27 = vector.broadcast %cst_13 : f32 to vector<1x128xf32>
    %28 = arith.mulf %26, %27 : vector<1x128xf32>
    %29 = vector.broadcast %7 : f32 to vector<1x128xf32>
    %30 = arith.addf %29, %28 : vector<1x128xf32>
    %31 = arith.subf %16, %13 : f32
    %32 = vector.broadcast %31 : f32 to vector<1x128xf32>
    %33 = arith.mulf %32, %23 : vector<1x128xf32>
    %cst_14 = arith.constant 0.0666666701 : f32
    %34 = vector.broadcast %cst_14 : f32 to vector<1x128xf32>
    %35 = arith.mulf %33, %34 : vector<1x128xf32>
    %36 = vector.broadcast %13 : f32 to vector<1x128xf32>
    %37 = arith.addf %36, %35 : vector<1x128xf32>
    %38 = tpu.iota {dimensions = array<i32: 0>} : vector<8x128xi32>
    %39 = arith.sitofp %38 : vector<8x128xi32> to vector<8x128xf32>
    %40 = tpu.iota {dimensions = array<i32: 0>} : vector<16x128xi32>
    %41 = arith.sitofp %40 : vector<16x128xi32> to vector<16x128xf32>
    %cst_15 = arith.constant 1.000000e-01 : f32
    %42 = vector.broadcast %cst_15 : f32 to vector<1x128xf32>
    %43 = arith.mulf %37, %42 : vector<1x128xf32>
    %cst_16 = arith.constant 1.000000e-01 : f32
    %44 = vector.broadcast %cst_16 : f32 to vector<1x128xf32>
    %45 = arith.mulf %30, %44 : vector<1x128xf32>
    %46 = vector.broadcast %43 : vector<1x128xf32> to vector<8x128xf32>
    %47 = arith.mulf %46, %39 : vector<8x128xf32>
    %48 = vector.broadcast %2 : f32 to vector<8x128xf32>
    %49 = arith.addf %48, %47 : vector<8x128xf32>
    %50 = math.cos %49 : vector<8x128xf32>
    %51 = math.sin %49 : vector<8x128xf32>
    %52 = vector.broadcast %45 : vector<1x128xf32> to vector<8x128xf32>
    %53 = arith.mulf %52, %50 : vector<8x128xf32>
    %54 = vector.broadcast %45 : vector<1x128xf32> to vector<8x128xf32>
    %55 = arith.mulf %54, %51 : vector<8x128xf32>
    %cst_17 = arith.constant 0.000000e+00 : f32
    %56 = vector.broadcast %cst_17 : f32 to vector<1x128xf32>
    %cst_18 = arith.constant 0.000000e+00 : f32
    %57 = vector.broadcast %cst_18 : f32 to vector<7x128xf32>
    %cst_19 = arith.constant 0.000000e+00 : f32
    %58 = vector.broadcast %cst_19 : f32 to vector<1x128xf32>
    %59 = vector.extract_strided_slice %53 {offsets = [0, 0], sizes = [7, 128], strides = [1, 1]} : vector<8x128xf32> to vector<7x128xf32>
    %60 = tpu.concatenate %58, %59 in 0 : vector<1x128xf32>, vector<7x128xf32> -> vector<8x128xf32>
    %61 = arith.addf %53, %60 : vector<8x128xf32>
    %cst_20 = arith.constant 0.000000e+00 : f32
    %62 = vector.broadcast %cst_20 : f32 to vector<2x128xf32>
    %63 = vector.extract_strided_slice %61 {offsets = [0, 0], sizes = [6, 128], strides = [1, 1]} : vector<8x128xf32> to vector<6x128xf32>
    %64 = tpu.concatenate %62, %63 in 0 : vector<2x128xf32>, vector<6x128xf32> -> vector<8x128xf32>
    %65 = arith.addf %61, %64 : vector<8x128xf32>
    %cst_21 = arith.constant 0.000000e+00 : f32
    %66 = vector.broadcast %cst_21 : f32 to vector<4x128xf32>
    %67 = vector.extract_strided_slice %65 {offsets = [0, 0], sizes = [4, 128], strides = [1, 1]} : vector<8x128xf32> to vector<4x128xf32>
    %68 = tpu.concatenate %66, %67 in 0 : vector<4x128xf32>, vector<4x128xf32> -> vector<8x128xf32>
    %69 = arith.addf %65, %68 : vector<8x128xf32>
    %70 = tpu.concatenate %56, %69, %57 in 0 : vector<1x128xf32>, vector<8x128xf32>, vector<7x128xf32> -> vector<16x128xf32>
    %71 = vector.broadcast %0 : f32 to vector<16x128xf32>
    %72 = arith.addf %71, %70 : vector<16x128xf32>
    %cst_22 = arith.constant 0.000000e+00 : f32
    %73 = vector.broadcast %cst_22 : f32 to vector<1x128xf32>
    %74 = vector.extract_strided_slice %55 {offsets = [0, 0], sizes = [7, 128], strides = [1, 1]} : vector<8x128xf32> to vector<7x128xf32>
    %75 = tpu.concatenate %73, %74 in 0 : vector<1x128xf32>, vector<7x128xf32> -> vector<8x128xf32>
    %76 = arith.addf %55, %75 : vector<8x128xf32>
    %cst_23 = arith.constant 0.000000e+00 : f32
    %77 = vector.broadcast %cst_23 : f32 to vector<2x128xf32>
    %78 = vector.extract_strided_slice %76 {offsets = [0, 0], sizes = [6, 128], strides = [1, 1]} : vector<8x128xf32> to vector<6x128xf32>
    %79 = tpu.concatenate %77, %78 in 0 : vector<2x128xf32>, vector<6x128xf32> -> vector<8x128xf32>
    %80 = arith.addf %76, %79 : vector<8x128xf32>
    %cst_24 = arith.constant 0.000000e+00 : f32
    %81 = vector.broadcast %cst_24 : f32 to vector<4x128xf32>
    %82 = vector.extract_strided_slice %80 {offsets = [0, 0], sizes = [4, 128], strides = [1, 1]} : vector<8x128xf32> to vector<4x128xf32>
    %83 = tpu.concatenate %81, %82 in 0 : vector<4x128xf32>, vector<4x128xf32> -> vector<8x128xf32>
    %84 = arith.addf %80, %83 : vector<8x128xf32>
    %85 = tpu.concatenate %56, %84, %57 in 0 : vector<1x128xf32>, vector<8x128xf32>, vector<7x128xf32> -> vector<16x128xf32>
    %86 = vector.broadcast %1 : f32 to vector<16x128xf32>
    %87 = arith.addf %86, %85 : vector<16x128xf32>
    %88 = vector.broadcast %43 : vector<1x128xf32> to vector<16x128xf32>
    %89 = arith.mulf %88, %41 : vector<16x128xf32>
    %90 = vector.broadcast %2 : f32 to vector<16x128xf32>
    %91 = arith.addf %90, %89 : vector<16x128xf32>
    %c0_25 = arith.constant 0 : index
    %c0_26 = arith.constant 0 : index
    %c0_27 = arith.constant 0 : index
    %92 = vector.load %arg2[%c0_25, %c0_26, %c0_27] : memref<3x16x128xf32, #tpu.memory_space<vmem>>, vector<1x16x128xf32>
    %93 = vector.shape_cast %92 : vector<1x16x128xf32> to vector<16x128xf32>
    %94 = vector.shape_cast %72 : vector<16x128xf32> to vector<1x16x128xf32>
    tpu.vector_store %arg2[%c0_25, %c0_26, %c0_27], %94 {strides = array<i32>} : memref<3x16x128xf32, #tpu.memory_space<vmem>>, vector<1x16x128xf32>,
    %c1_28 = arith.constant 1 : index
    %c0_29 = arith.constant 0 : index
    %c0_30 = arith.constant 0 : index
    %95 = vector.load %arg2[%c1_28, %c0_29, %c0_30] : memref<3x16x128xf32, #tpu.memory_space<vmem>>, vector<1x16x128xf32>
    %96 = vector.shape_cast %95 : vector<1x16x128xf32> to vector<16x128xf32>
    %97 = vector.shape_cast %87 : vector<16x128xf32> to vector<1x16x128xf32>
    tpu.vector_store %arg2[%c1_28, %c0_29, %c0_30], %97 {strides = array<i32>} : memref<3x16x128xf32, #tpu.memory_space<vmem>>, vector<1x16x128xf32>,
    %c2_31 = arith.constant 2 : index
    %c0_32 = arith.constant 0 : index
    %c0_33 = arith.constant 0 : index
    %98 = vector.load %arg2[%c2_31, %c0_32, %c0_33] : memref<3x16x128xf32, #tpu.memory_space<vmem>>, vector<1x16x128xf32>
    %99 = vector.shape_cast %98 : vector<1x16x128xf32> to vector<16x128xf32>
    %100 = vector.shape_cast %91 : vector<16x128xf32> to vector<1x16x128xf32>
    tpu.vector_store %arg2[%c2_31, %c0_32, %c0_33], %100 {strides = array<i32>} : memref<3x16x128xf32, #tpu.memory_space<vmem>>, vector<1x16x128xf32>,
    %101 = vector.extract_strided_slice %72 {offsets = [0, 0], sizes = [8, 128], strides = [1, 1]} : vector<16x128xf32> to vector<8x128xf32>
    %cst_34 = arith.constant 2.000000e+00 : f32
    %102 = vector.broadcast %cst_34 : f32 to vector<8x128xf32>
    %103 = arith.subf %101, %102 : vector<8x128xf32>
    %104 = vector.extract_strided_slice %87 {offsets = [0, 0], sizes = [8, 128], strides = [1, 1]} : vector<16x128xf32> to vector<8x128xf32>
    %cst_35 = arith.constant 1.500000e+00 : f32
    %105 = vector.broadcast %cst_35 : f32 to vector<8x128xf32>
    %106 = arith.subf %104, %105 : vector<8x128xf32>
    %107 = arith.mulf %103, %103 : vector<8x128xf32>
    %108 = arith.mulf %106, %106 : vector<8x128xf32>
    %109 = arith.addf %107, %108 : vector<8x128xf32>
    %cst_36 = arith.constant dense<0.000000e+00> : vector<128xf32>
    %110 = vector.multi_reduction <add>, %109, %cst_36 [0] : vector<8x128xf32> to vector<128xf32>
    %111 = vector.shape_cast %110 : vector<128xf32> to vector<1x128xf32>
    %112 = arith.mulf %30, %30 : vector<1x128xf32>
    %113 = arith.mulf %37, %37 : vector<1x128xf32>
    %114 = arith.addf %112, %113 : vector<1x128xf32>
    %115 = vector.extract_strided_slice %72 {offsets = [8, 0], sizes = [1, 128], strides = [1, 1]} : vector<16x128xf32> to vector<1x128xf32>
    %cst_37 = arith.constant 2.000000e+00 : f32
    %116 = vector.broadcast %cst_37 : f32 to vector<1x128xf32>
    %117 = arith.subf %115, %116 : vector<1x128xf32>
    %118 = vector.extract_strided_slice %87 {offsets = [8, 0], sizes = [1, 128], strides = [1, 1]} : vector<16x128xf32> to vector<1x128xf32>
    %cst_38 = arith.constant 1.500000e+00 : f32
    %119 = vector.broadcast %cst_38 : f32 to vector<1x128xf32>
    %120 = arith.subf %118, %119 : vector<1x128xf32>
    %cst_39 = arith.constant 1.000000e+00 : f32
    %121 = vector.broadcast %cst_39 : f32 to vector<1x128xf32>
    %122 = arith.mulf %121, %111 : vector<1x128xf32>
    %cst_40 = arith.constant 8.000000e-01 : f32
    %123 = vector.broadcast %cst_40 : f32 to vector<1x128xf32>
    %124 = arith.mulf %123, %114 : vector<1x128xf32>
    %125 = arith.addf %122, %124 : vector<1x128xf32>
    %126 = arith.mulf %117, %117 : vector<1x128xf32>
    %127 = arith.mulf %120, %120 : vector<1x128xf32>
    %128 = arith.addf %126, %127 : vector<1x128xf32>
    %cst_41 = arith.constant 5.000000e+00 : f32
    %129 = vector.broadcast %cst_41 : f32 to vector<1x128xf32>
    %130 = arith.mulf %129, %128 : vector<1x128xf32>
    %131 = arith.addf %125, %130 : vector<1x128xf32>
    %cst_42 = arith.constant dense<0x7F800000> : vector<1xf32>
    %132 = vector.multi_reduction <minimumf>, %131, %cst_42 [1] : vector<1x128xf32> to vector<1xf32>
    %133 = vector.shape_cast %132 : vector<1xf32> to vector<1x1xf32>
    %134 = vector.broadcast %133 : vector<1x1xf32> to vector<1x128xf32>
    %135 = arith.subf %134, %131 : vector<1x128xf32>
    %136 = math.exp %135 : vector<1x128xf32>
    %cst_43 = arith.constant dense<0.000000e+00> : vector<1xf32>
    %137 = vector.multi_reduction <add>, %136, %cst_43 [1] : vector<1x128xf32> to vector<1xf32>
    %138 = vector.shape_cast %137 : vector<1xf32> to vector<1x1xf32>
    %139 = tpu.reciprocal %138 {approx = true} : vector<1x1xf32> -> vector<1x1xf32>
    %140 = vector.broadcast %139 : vector<1x1xf32> to vector<1x128xf32>
    %141 = arith.mulf %136, %140 : vector<1x128xf32>
    %142 = arith.sitofp %17 : vector<1x128xi32> to vector<1x128xf32>
    %143 = vector.broadcast %133 : vector<1x1xf32> to vector<1x128xf32>
    %144 = arith.cmpf oeq, %131, %143 : vector<1x128xf32>
    %cst_44 = arith.constant 1.280000e+02 : f32
    %145 = vector.broadcast %cst_44 : f32 to vector<1x128xf32>
    %146 = arith.select %144, %142, %145 : vector<1x128xi1>, vector<1x128xf32>
    %cst_45 = arith.constant dense<0x7F800000> : vector<1xf32>
    %147 = vector.multi_reduction <minimumf>, %146, %cst_45 [1] : vector<1x128xf32> to vector<1xf32>
    %148 = vector.shape_cast %147 : vector<1xf32> to vector<1x1xf32>
    %149 = vector.broadcast %148 : vector<1x1xf32> to vector<1x128xf32>
    %150 = arith.cmpf oeq, %142, %149 : vector<1x128xf32>
    %cst_46 = arith.constant 0.000000e+00 : f32
    %151 = vector.broadcast %cst_46 : f32 to vector<4x128xf32>
    %152 = tpu.concatenate %131, %141, %30, %37, %151 in 0 : vector<1x128xf32>, vector<1x128xf32>, vector<1x128xf32>, vector<1x128xf32>, vector<4x128xf32> -> vector<8x128xf32>
    %c0_47 = arith.constant 0 : index
    %c0_48 = arith.constant 0 : index
    %153 = vector.load %arg3[%c0_47, %c0_48] : memref<8x128xf32, #tpu.memory_space<vmem>>, vector<8x128xf32>
    tpu.vector_store %arg3[%c0_47, %c0_48], %152 {strides = array<i32>} : memref<8x128xf32, #tpu.memory_space<vmem>>, vector<8x128xf32>,
    %cst_49 = arith.constant 0.000000e+00 : f32
    %154 = vector.shape_cast %150 : vector<1x128xi1> to vector<1x128xi1>
    %155 = vector.broadcast %154 : vector<1x128xi1> to vector<16x128xi1>
    %156 = vector.broadcast %cst_49 : f32 to vector<16x128xf32>
    %157 = arith.select %155, %72, %156 : vector<16x128xi1>, vector<16x128xf32>
    %cst_50 = arith.constant dense<0.000000e+00> : vector<16xf32>
    %158 = vector.multi_reduction <add>, %157, %cst_50 [1] : vector<16x128xf32> to vector<16xf32>
    %159 = vector.shape_cast %158 : vector<16xf32> to vector<16x1xf32>
    %cst_51 = arith.constant 0.000000e+00 : f32
    %160 = vector.shape_cast %150 : vector<1x128xi1> to vector<1x128xi1>
    %161 = vector.broadcast %160 : vector<1x128xi1> to vector<16x128xi1>
    %162 = vector.broadcast %cst_51 : f32 to vector<16x128xf32>
    %163 = arith.select %161, %87, %162 : vector<16x128xi1>, vector<16x128xf32>
    %cst_52 = arith.constant dense<0.000000e+00> : vector<16xf32>
    %164 = vector.multi_reduction <add>, %163, %cst_52 [1] : vector<16x128xf32> to vector<16xf32>
    %165 = vector.shape_cast %164 : vector<16xf32> to vector<16x1xf32>
    %cst_53 = arith.constant 0.000000e+00 : f32
    %166 = vector.shape_cast %150 : vector<1x128xi1> to vector<1x128xi1>
    %167 = vector.broadcast %166 : vector<1x128xi1> to vector<16x128xi1>
    %168 = vector.broadcast %cst_53 : f32 to vector<16x128xf32>
    %169 = arith.select %167, %91, %168 : vector<16x128xi1>, vector<16x128xf32>
    %cst_54 = arith.constant dense<0.000000e+00> : vector<16xf32>
    %170 = vector.multi_reduction <add>, %169, %cst_54 [1] : vector<16x128xf32> to vector<16xf32>
    %171 = vector.shape_cast %170 : vector<16xf32> to vector<16x1xf32>
    %cst_55 = arith.constant 0.000000e+00 : f32
    %172 = vector.broadcast %cst_55 : f32 to vector<1x128xf32>
    %173 = arith.select %150, %30, %172 : vector<1x128xi1>, vector<1x128xf32>
    %cst_56 = arith.constant dense<0.000000e+00> : vector<1xf32>
    %174 = vector.multi_reduction <add>, %173, %cst_56 [1] : vector<1x128xf32> to vector<1xf32>
    %175 = vector.shape_cast %174 : vector<1xf32> to vector<1x1xf32>
    %cst_57 = arith.constant 0.000000e+00 : f32
    %176 = vector.broadcast %cst_57 : f32 to vector<1x128xf32>
    %177 = arith.select %150, %37, %176 : vector<1x128xi1>, vector<1x128xf32>
    %cst_58 = arith.constant dense<0.000000e+00> : vector<1xf32>
    %178 = vector.multi_reduction <add>, %177, %cst_58 [1] : vector<1x128xf32> to vector<1xf32>
    %179 = vector.shape_cast %178 : vector<1xf32> to vector<1x1xf32>
    %180 = vector.shape_cast %175 : vector<1x1xf32> to vector<1x1xf32>
    %181 = vector.broadcast %180 : vector<1x1xf32> to vector<16x1xf32>
    %182 = vector.shape_cast %179 : vector<1x1xf32> to vector<1x1xf32>
    %183 = vector.broadcast %182 : vector<1x1xf32> to vector<16x1xf32>
    %cst_59 = arith.constant 0.000000e+00 : f32
    %184 = vector.broadcast %cst_59 : f32 to vector<16x3xf32>
    %185 = tpu.concatenate %159, %165, %171, %181, %183, %184 in 1 : vector<16x1xf32>, vector<16x1xf32>, vector<16x1xf32>, vector<16x1xf32>, vector<16x1xf32>, vector<16x3xf32> -> vector<16x8xf32>
    %c0_60 = arith.constant 0 : index
    %c0_61 = arith.constant 0 : index
    %186 = vector.load %arg4[%c0_60, %c0_61] : memref<16x8xf32, #tpu.memory_space<vmem>>, vector<16x8xf32>
    tpu.vector_store %arg4[%c0_60, %c0_61], %185 {strides = array<i32>} : memref<16x8xf32, #tpu.memory_space<vmem>>, vector<16x8xf32>,
    return
  }
}

</mosaic_0001>

<llo_original>
// kernel: dwa_forward.1
$region0: #{dwa_forward.1}
  #allocation0 [shape = 'u32[]', space=smem, size = 0x4, offset = 0x4, fixed_abs, tag = 'smem constant byte address 0x4 - core index']
  #allocation1 [shape = 'u32[144,128]{1,0:T(1,128)}', space=vmem, size = 0x12000, scoped, tag = 'internal scratch']
  %s0 = inlined_call_operand.hbm [shape: f32[3], index: 0, kind: input, shape index: {}]
  %s1 = inlined_call_operand.vmem [shape: f32[2], index: 1, kind: input, shape index: {}]
  %s2 = inlined_call_operand.vmem [shape: f32[3,16,128], index: 2, kind: output, shape index: {0}]
  %s3 = inlined_call_operand.vmem [shape: f32[8,128], index: 3, kind: output, shape index: {1}]
  %s4 = inlined_call_operand.vmem [shape: f32[16,8], index: 4, kind: output, shape index: {2}]
  %5 = xla_tuple %s2, %s3, %s4
  %s6 = sld [smem:[#allocation0]]
  $region42: #{dwa_forward.1} parent=0
    _
  %s8 = ssub.s32 1, %s6
  %s9 = scalar_select 0, %s8, %s6
  $region1: #{dwa_forward.1} parent=0
    #allocation2 [shape = 'u8[512]{0}', space=smem, size = 0x200, scoped, tag = 'input window, operand 0, single buffered']
    #allocation3 [shape = 's32[1]{0}', space=sflag, size = 0x4, scoped, tag = 'scoped memory for dwa_forward.1']
    #allocation4 [shape = 's32[1]{0}', space=sflag, size = 0x4, scoped, tag = 'scoped memory for dwa_forward.1']
    #allocation5 [shape = 'u8[512]{0}', space=smem, size = 0x200, scoped, tag = 'input window, operand 1, single buffered']
    %10 = vsyncpa [#allocation3], 0
    %11 = vsyncpa [#allocation4], 0
    // Predicated region
    $region2: #{dwa_forward.1} parent=1 // pred_check
      _
    $region3: #{dwa_forward.1} parent=1 // pred_check_branch
      %13 = sbr.rel (0) target = $region5
    $region4: #{dwa_forward.1} parent=1 // pred_region
      %s15 = ssub.s32 16, 16
      %16 = vsyncadd [#allocation3], %s15
      %19 = dma.hbm_to_smem %s0, 16, [#allocation2], [#allocation3]
    $region5: #{dwa_forward.1} parent=1 // pred_fallthru
      _
    // Predicated region
    $region6: #{dwa_forward.1} parent=1 // pred_check
      _
    $region7: #{dwa_forward.1} parent=1 // pred_check_branch
      %21 = sbr.rel (0) target = $region9
    $region8: #{dwa_forward.1} parent=1 // pred_region
      %s23 = ssub.s32 16, 16
      %24 = vsyncadd [#allocation4], %s23
      %s26 = sshll.u32 %s1, 4
      %s27 = int_to_ptr.vmem [resolvable:$true] %s26
      %29 = dma.vmem_to_smem %s27, 16, [#allocation5], [#allocation4]
    $region9: #{dwa_forward.1} parent=1 // pred_fallthru
      _
    // Predicated region
    $region10: #{dwa_forward.1} parent=1 // pred_check
      _
    $region11: #{dwa_forward.1} parent=1 // pred_check_branch
      %31 = sbr.rel (0) target = $region13
    $region12: #{dwa_forward.1} parent=1 // pred_region
      %32 = dma.done [#allocation3], 16
    $region13: #{dwa_forward.1} parent=1 // pred_fallthru
      _
    // Predicated region
    $region14: #{dwa_forward.1} parent=1 // pred_check
      _
    $region15: #{dwa_forward.1} parent=1 // pred_check_branch
      %34 = sbr.rel (0) target = $region17
    $region16: #{dwa_forward.1} parent=1 // pred_region
      %35 = dma.done [#allocation4], 16
    $region17: #{dwa_forward.1} parent=1 // pred_fallthru
      _
    %36 = sfence
    %s37 = sld [smem:[#allocation2]]
    %s38 = sld [smem:[#allocation2 + $0x1]]
    %s39 = sld [smem:[#allocation2 + $0x2]]
    %s40 = sld [smem:[#allocation5]]
    %s41 = sld [smem:[#allocation5 + $0x1]]
    %s42 = ssub.f32 %s40, 0.05
    %s43 = smax.f32 %s42, 0.0
    %s44 = sadd.f32 %s40, 0.05
    %s45 = smin.f32 %s44, 1.0
    %s46 = ssub.f32 %s41, 0.1
    %s47 = smax.f32 %s46, -1.0
    %s48 = sadd.f32 %s41, 0.1
    %s49 = smin.f32 %s48, 1.0
    %v50 = vlaneseq
    %v51 = vand.u32 %v50, 127
    %v52 = vshra.s32 %v51, 4
    %v53 = vcvt.s32.f32 %v52
    %v54 = vand.u32 %v51, 15
    %v55 = vcvt.s32.f32 %v54
    %s56 = ssub.f32 %s45, %s43
    %v57 = vstv %s56
    %v58 = vmul.f32 %v57, %v53
    %v59 = vmul.f32 %v58, 0.14285715
    %v60 = vstv %s43
    %v61 = vadd.f32 %v60, %v59
    %s62 = ssub.f32 %s49, %s47
    %v63 = vstv %s62
    %v64 = vmul.f32 %v63, %v55
    %v65 = vmul.f32 %v64, 0.06666667
    %v66 = vstv %s47
    %v67 = vadd.f32 %v66, %v65
    %v68 = vlaneseq
    %v69 = vshrl.u32 %v68, 7
    %v70 = vcvt.s32.f32 %v69
    %v71 = vadd.s32 %v69, 8
    %v72 = vcvt.s32.f32 %v71
    %v73 = vmul.f32 %v67, 0.1
    %v74 = vmul.f32 %v61, 0.1
    %v75 = vmul.f32 %v73, %v70
    %v76 = vstv %s39
    %v77 = vadd.f32 %v76, %v75
    %v78 = vand.u32 2147483647, %v77
    %vm79 = vcmp.le.f32.partialorder %v78, 0.7853982
    %vm80 = vcmp.lt.s32.totalorder %v77, 0
    %v81 = vand.u32 %v77, 2139095040
    %v82 = vshrl.u32 %v81, 23
    %v83 = vsub.s32 %v82, 127
    %v84 = vand.u32 2147483647, %v77
    %v85 = vand.u32 %v84, 8388607
    %v86 = vor.u32 %v85, 8388608
    %v87 = vsub.s32 0, %v86
    %v88 = vadd.s32 %v83, 1
    %vm89 = vcmp.gt.s32.totalorder %v88, 0
    %v90 = vsel %vm89, %v88, 0
    %v91 = vshrl.u32 %v90, 5
    %v92 = vand.u32 %v90, 31
    %v93 = vsub.s32 32, %v92
    %v94 = vshrl.u32 683565275, %v93
    %v95 = vshll.u32 683565275, %v92
    %v96 = vshrl.u32 2475754826, %v93
    %v97 = vor.u32 %v95, %v96
    %v98 = vshll.u32 2475754826, %v92
    %v99 = vshrl.u32 2131351028, %v93
    %v100 = vor.u32 %v98, %v99
    %v101 = vshll.u32 2131351028, %v92
    %v102 = vshrl.u32 2102212464, %v93
    %v103 = vor.u32 %v101, %v102
    %v104 = vshll.u32 2102212464, %v92
    %v105 = vshrl.u32 920167782, %v93
    %v106 = vor.u32 %v104, %v105
    %v107 = vshll.u32 920167782, %v92
    %v108 = vshrl.u32 1326507024, %v93
    %v109 = vor.u32 %v107, %v108
    %vm110 = vcmp.lt.s32.totalorder %v91, 1
    %vm111 = vcmp.lt.s32.totalorder %v91, 2
    %vm112 = vcmp.lt.s32.totalorder %v91, 3
    %vm113 = vcmp.lt.s32.totalorder %v91, 4
    %v114 = vsel %vm110, %v94, %v97
    %v115 = vsel %vm113, %v103, 2102212464
    %v116 = vsel %vm112, %v100, %v115
    %v117 = vsel %vm111, %v114, %v116
    %v118 = vsel %vm110, %v97, %v100
    %v119 = vsel %vm113, %v106, 920167782
    %v120 = vsel %vm112, %v103, %v119
    %v121 = vsel %vm111, %v118, %v120
    %v122 = vsel %vm110, %v100, %v103
    %v123 = vsel %vm113, %v109, 1326507024
    %v124 = vsel %vm112, %v106, %v123
    %v125 = vsel %vm111, %v122, %v124
    %v126 = vshll.u32 %v86, 8
    %v127 = vmul.u32.u64.compose %v126, %v125
    %v128 = vextract.low.u32 %v127
    %v129 = vextract.high.u32 %v127
    %v130 = vmul.u32.u64.compose %v126, %v121
    %v131 = vextract.low.u32 %v130
    %v132 = vextract.high.u32 %v130
    %v133 = vmul.u32 %v126, %v117
    %v134 = vadd.s32 %v129, %v131
    %vm135 = vc.u32 %v129, %v131
    %v136 = vadd.s32 %v132, 1
    %v137 = vsel %vm135, %v136, %v132
    %v138 = vadd.s32 %v133, %v137
    %v139 = vadd.s32 %v138, 536870912
    %v140 = vshrl.u32 %v139, 30
    %v141 = vshll.u32 %v140, 30
    %v142 = vsub.s32 %v138, %v141
    %vm143 = vcmp.lt.s32.totalorder %v142, 0
    %v144 = vsub.s32 0, %v142
    %v145 = vsel %vm143, %v144, %v142
    %v146 = vclz %v145
    %v147 = vsub.s32 %v146, 2
    %vm148 = vcmp.gt.s32.totalorder 0, %v147
    %v149 = vsel %vm148, 0, %v147
    %v150 = vsub.s32 32, %v149
    %v151 = vshll.u32 %v142, %v149
    %v152 = vshrl.u32 %v134, %v150
    %v153 = vor.u32 %v151, %v152
    %v154 = vsub.s32 4294967266, %v149
    %v155 = vadd.s32 %v154, 127
    %v156 = vshll.u32 %v155, 23
    %v157 = vor.u32 4788187, %v156
    %v158 = vand.u32 2147483647, %v157
    %v160 = vcvt.s32.f32 %v153
    %v161 = vmul.f32 %v160, %v158
    %v162 = vxor.u32 %v161, 2147483648
    %v163 = vsel %vm80, %v162, %v161
    %v164 = vsub.s32 4, %v140
    %v165 = vsel %vm80, %v164, %v140
    %v166 = vsel %vm79, %v77, %v163
    %v167 = vsel %vm79, 0, %v165
    %v168 = vcosq.f32.pop %v166
    %v169 = vsinq.f32.pop %v166
    %vm170 = vweird.f32 %v77
    %v171 = vand.u32 %v167, 3
    %vm172 = vcmp.lt.s32.totalorder %v171, 2
    %vm173 = vcmp.eq.s32.totalorder %v171, 0
    %v174 = vxor.u32 %v169, 2147483648
    %v175 = vsel %vm173, %v168, %v174
    %vm176 = vcmp.eq.s32.totalorder %v171, 2
    %v177 = vxor.u32 %v168, 2147483648
    %v178 = vsel %vm176, %v177, %v169
    %v179 = vsel %vm172, %v175, %v178
    %v180 = vsel %vm170, nan, %v179
    %v181 = vand.u32 2147483647, %v77
    %vm182 = vcmp.le.f32.partialorder %v181, 0.7853982
    %vm183 = vcmp.lt.s32.totalorder %v77, 0
    %v184 = vand.u32 %v77, 2139095040
    %v185 = vshrl.u32 %v184, 23
    %v186 = vsub.s32 %v185, 127
    %v187 = vand.u32 2147483647, %v77
    %v188 = vand.u32 %v187, 8388607
    %v189 = vor.u32 %v188, 8388608
    %v190 = vsub.s32 0, %v189
    %v191 = vadd.s32 %v186, 1
    %vm192 = vcmp.gt.s32.totalorder %v191, 0
    %v193 = vsel %vm192, %v191, 0
    %v194 = vshrl.u32 %v193, 5
    %v195 = vand.u32 %v193, 31
    %v196 = vsub.s32 32, %v195
    %v197 = vshrl.u32 683565275, %v196
    %v198 = vshll.u32 683565275, %v195
    %v199 = vshrl.u32 2475754826, %v196
    %v200 = vor.u32 %v198, %v199
    %v201 = vshll.u32 2475754826, %v195
    %v202 = vshrl.u32 2131351028, %v196
    %v203 = vor.u32 %v201, %v202
    %v204 = vshll.u32 2131351028, %v195
    %v205 = vshrl.u32 2102212464, %v196
    %v206 = vor.u32 %v204, %v205
    %v207 = vshll.u32 2102212464, %v195
    %v208 = vshrl.u32 920167782, %v196
    %v209 = vor.u32 %v207, %v208
    %v210 = vshll.u32 920167782, %v195
    %v211 = vshrl.u32 1326507024, %v196
    %v212 = vor.u32 %v210, %v211
    %vm213 = vcmp.lt.s32.totalorder %v194, 1
    %vm214 = vcmp.lt.s32.totalorder %v194, 2
    %vm215 = vcmp.lt.s32.totalorder %v194, 3
    %vm216 = vcmp.lt.s32.totalorder %v194, 4
    %v217 = vsel %vm213, %v197, %v200
    %v218 = vsel %vm216, %v206, 2102212464
    %v219 = vsel %vm215, %v203, %v218
    %v220 = vsel %vm214, %v217, %v219
    %v221 = vsel %vm213, %v200, %v203
    %v222 = vsel %vm216, %v209, 920167782
    %v223 = vsel %vm215, %v206, %v222
    %v224 = vsel %vm214, %v221, %v223
    %v225 = vsel %vm213, %v203, %v206
    %v226 = vsel %vm216, %v212, 1326507024
    %v227 = vsel %vm215, %v209, %v226
    %v228 = vsel %vm214, %v225, %v227
    %v229 = vshll.u32 %v189, 8
    %v230 = vmul.u32.u64.compose %v229, %v228
    %v231 = vextract.low.u32 %v230
    %v232 = vextract.high.u32 %v230
    %v233 = vmul.u32.u64.compose %v229, %v224
    %v234 = vextract.low.u32 %v233
    %v235 = vextract.high.u32 %v233
    %v236 = vmul.u32 %v229, %v220
    %v237 = vadd.s32 %v232, %v234
    %vm238 = vc.u32 %v232, %v234
    %v239 = vadd.s32 %v235, 1
    %v240 = vsel %vm238, %v239, %v235
    %v241 = vadd.s32 %v236, %v240
    %v242 = vadd.s32 %v241, 536870912
    %v243 = vshrl.u32 %v242, 30
    %v244 = vshll.u32 %v243, 30
    %v245 = vsub.s32 %v241, %v244
    %vm246 = vcmp.lt.s32.totalorder %v245, 0
    %v247 = vsub.s32 0, %v245
    %v248 = vsel %vm246, %v247, %v245
    %v249 = vclz %v248
    %v250 = vsub.s32 %v249, 2
    %vm251 = vcmp.gt.s32.totalorder 0, %v250
    %v252 = vsel %vm251, 0, %v250
    %v253 = vsub.s32 32, %v252
    %v254 = vshll.u32 %v245, %v252
    %v255 = vshrl.u32 %v237, %v253
    %v256 = vor.u32 %v254, %v255
    %v257 = vsub.s32 4294967266, %v252
    %v258 = vadd.s32 %v257, 127
    %v259 = vshll.u32 %v258, 23
    %v260 = vor.u32 4788187, %v259
    %v261 = vand.u32 2147483647, %v260
    %v263 = vcvt.s32.f32 %v256
    %v264 = vmul.f32 %v263, %v261
    %v265 = vxor.u32 %v264, 2147483648
    %v266 = vsel %vm183, %v265, %v264
    %v267 = vsub.s32 4, %v243
    %v268 = vsel %vm183, %v267, %v243
    %v269 = vsel %vm182, %v77, %v266
    %v270 = vsel %vm182, 0, %v268
    %v271 = vcosq.f32.pop %v269
    %v272 = vsinq.f32.pop %v269
    %vm273 = vweird.f32 %v77
    %v274 = vadd.s32 %v270, 3
    %v275 = vand.u32 %v274, 3
    %vm276 = vcmp.lt.s32.totalorder %v275, 2
    %vm277 = vcmp.eq.s32.totalorder %v275, 0
    %v278 = vxor.u32 %v272, 2147483648
    %v279 = vsel %vm277, %v271, %v278
    %vm280 = vcmp.eq.s32.totalorder %v275, 2
    %v281 = vxor.u32 %v271, 2147483648
    %v282 = vsel %vm280, %v281, %v272
    %v283 = vsel %vm276, %v279, %v282
    %v284 = vsel %vm273, nan, %v283
    %v285 = vmul.f32 %v74, %v180
    %v286 = vmul.f32 %v74, %v284
    %v288 = vrot.slane %v285, 7
    %vm290 = vcmask 1040384
    %v291 = vsel %vm290, 0.0, %v288
    %v292 = vadd.f32 %v285, %v291
    %v294 = vrot.slane %v292, 6
    %vm296 = vcmask 1041408
    %v297 = vsel %vm296, 0.0, %v294
    %v298 = vadd.f32 %v292, %v297
    %v300 = vrot.slane %v298, 4
    %vm302 = vcmask 1043456
    %v303 = vsel %vm302, 0.0, %v300
    %v304 = vadd.f32 %v298, %v303
    %v306 = vrot.slane %v304, 7
    %v308 = vsel %vm290, 0.0, %v306
    %v309 = vsel %vm290, %v306, 0.0
    %v310 = vstv %s37
    %v311 = vadd.f32 %v310, %v308
    %v312 = vadd.f32 %v310, %v309
    %v314 = vrot.slane %v286, 7
    %v316 = vsel %vm290, 0.0, %v314
    %v317 = vadd.f32 %v286, %v316
    %v319 = vrot.slane %v317, 6
    %v321 = vsel %vm296, 0.0, %v319
    %v322 = vadd.f32 %v317, %v321
    %v324 = vrot.slane %v322, 4
    %v326 = vsel %vm302, 0.0, %v324
    %v327 = vadd.f32 %v322, %v326
    %v329 = vrot.slane %v327, 7
    %v331 = vsel %vm290, 0.0, %v329
    %v332 = vsel %vm290, %v329, 0.0
    %v333 = vstv %s38
    %v334 = vadd.f32 %v333, %v331
    %v335 = vadd.f32 %v333, %v332
    %v336 = vmul.f32 %v73, %v72
    %v337 = vadd.f32 %v76, %v336
    %338 = vst [vmem:[%s2] sm:$0xff] %v311
    %339 = vst [vmem:[%s2 + $0x8] sm:$0xff] %v312
    %s340 = scalar_lea.vmem %s2, 16
    %341 = vst [vmem:[%s340] sm:$0xff] %v334
    %342 = vst [vmem:[%s340 + $0x8] sm:$0xff] %v335
    %s343 = scalar_lea.vmem %s2, 32
    %344 = vst [vmem:[%s343] sm:$0xff] %v77
    %345 = vst [vmem:[%s343 + $0x8] sm:$0xff] %v337
    %v346 = vsub.f32 %v311, 2.0
    %v347 = vsub.f32 %v334, 1.5
    %v348 = vmul.f32 %v346, %v346
    %v349 = vmul.f32 %v347, %v347
    %v350 = vadd.f32 %v348, %v349
    %v351 = vrot.slane %v350, 4
    %v352 = vadd.f32 %v350, %v351
    %v353 = vrot.slane %v352, 2
    %v354 = vadd.f32 %v352, %v353
    %v355 = vrot.slane %v354, 1
    %v356 = vadd.f32 %v354, %v355
    %v357 = vmul.f32 %v61, %v61
    %v358 = vmul.f32 %v67, %v67
    %v359 = vadd.f32 %v357, %v358
    %v360 = vsub.f32 %v312, 2.0
    %v361 = vsub.f32 %v335, 1.5
    %v362 = vmul.f32 %v359, 0.8
    %v363 = vadd.f32 %v356, %v362
    %v364 = vmul.f32 %v360, %v360
    %v365 = vmul.f32 %v361, %v361
    %v366 = vadd.f32 %v364, %v365
    %v367 = vmul.f32 %v366, 5.0
    %v368 = vadd.f32 %v363, %v367
    %v369 = vsel %vm290, %v368, inf
    %370 = vmin.xlane.f32.xlu0 %v369
    %v371 = vpop.xlane.xlu0 %370
    %v372 = vsub.f32 %v371, %v368
    %v373 = vmul.f32 %v372, 1.442695
    %v374 = vpow.pop %v373
    %v375 = vsel %vm290, %v374, 0.0
    %376 = vadd.xlane.f32.xlu0 %v375
    %v377 = vpop.xlane.xlu0 %376
    %v378 = vrcp.pop %v377
    %v379 = vmul.f32 %v374, %v378
    %v380 = vcvt.s32.f32 %v51
    %vm381 = vcmp.eq.f32.partialorder %v368, %v371
    %v382 = vsel %vm381, %v380, 128.0
    %v383 = vsel %vm290, %v382, inf
    %384 = vmin.xlane.f32.xlu0 %v383
    %v385 = vpop.xlane.xlu0 %384
    %vm386 = vcmp.eq.f32.partialorder %v380, %v385
    %v388 = vrot.slane %v379, 7
    %v390 = vsel %vm290, %v368, %v388
    %v391 = vsel %vm296, %v390, %v61
    %vm392 = vcmask 1042432
    %v393 = vsel %vm392, %v391, %v67
    %v394 = vsel %vm302, %v393, 0.0
    %395 = vst [vmem:[%s3] sm:$0xff] %v394
    %v396 = vsel %vm386, 1, 0
    %v397 = vlaneseq
    %v398 = vshrl.u32 %v397, 7
    %v399 = vsub.s32 0, %v398
    %v400 = vrot.slane %v396, %v399
    %vm401 = vcmp.eq.s32.totalorder %v400, 1
    %v402 = vsel %vm401, %v311, 0.0
    %v403 = vsel %vm401, %v312, 0.0
    %404 = vadd.xlane.f32.xlu0 %v402
    %v405 = vpop.xlane.xlu0 %404
    %406 = vadd.xlane.f32.xlu0 %v403
    %v407 = vpop.xlane.xlu0 %406
    %v408 = vsel %vm401, %v334, 0.0
    %v409 = vsel %vm401, %v335, 0.0
    %410 = vadd.xlane.f32.xlu0 %v408
    %v411 = vpop.xlane.xlu0 %410
    %412 = vadd.xlane.f32.xlu0 %v409
    %v413 = vpop.xlane.xlu0 %412
    %v414 = vsel %vm401, %v77, 0.0
    %v415 = vsel %vm401, %v337, 0.0
    %416 = vadd.xlane.f32.xlu0 %v414
    %v417 = vpop.xlane.xlu0 %416
    %418 = vadd.xlane.f32.xlu0 %v415
    %v419 = vpop.xlane.xlu0 %418
    %v420 = vsel %vm386, %v61, 0.0
    %v421 = vsel %vm290, %v420, 0.0
    %422 = vadd.xlane.f32.xlu0 %v421
    %v423 = vpop.xlane.xlu0 %422
    %v424 = vsel %vm386, %v67, 0.0
    %v425 = vsel %vm290, %v424, 0.0
    %426 = vadd.xlane.f32.xlu0 %v425
    %v427 = vpop.xlane.xlu0 %426
    %v428 = vlaneseq
    %v429 = vshrl.u32 %v428, 7
    %v430 = vsub.s32 0, %v429
    %v431 = vrot.slane %v423, %v430
    %v432 = vlaneseq
    %v433 = vshrl.u32 %v432, 7
    %v434 = vsub.s32 0, %v433
    %v435 = vrot.slane %v427, %v434
    %vm436 = vcmask 7168
    %v437 = vsel %vm436, %v405, %v411
    %v438 = vsel %vm436, %v407, %v413
    %vm439 = vcmask 15360
    %v440 = vsel %vm439, %v437, %v417
    %v441 = vsel %vm439, %v438, %v419
    %vm442 = vcmask 23552
    %v443 = vsel %vm442, %v440, %v431
    %v444 = vsel %vm442, %v441, %v431
    %vm445 = vcmask 31744
    %v446 = vsel %vm445, %v443, %v435
    %v447 = vsel %vm445, %v444, %v435
    %vm448 = vcmask 39936
    %v449 = vsel %vm448, %v446, 0.0
    %v450 = vsel %vm448, %v447, 0.0
    %vm451 = vcmask 64512
    %452 = vst.msk [vmem:[%s4] sm:$0xff] %vm451, %v449
    %453 = vst.msk [vmem:[%s4 + $0x8] sm:$0xff] %vm451, %v450
    // Predicated region
    $region18: #{dwa_forward.1} parent=1 // pred_check
      _
    $region19: #{dwa_forward.1} parent=1 // pred_check_branch
      %455 = sbr.rel (0) target = $region21
    $region20: #{dwa_forward.1} parent=1 // pred_region
      _
    $region21: #{dwa_forward.1} parent=1 // pred_fallthru
      _
    // Predicated region
    $region22: #{dwa_forward.1} parent=1 // pred_check
      _
    $region23: #{dwa_forward.1} parent=1 // pred_check_branch
      %457 = sbr.rel (0) target = $region25
    $region24: #{dwa_forward.1} parent=1 // pred_region
      _
    $region25: #{dwa_forward.1} parent=1 // pred_fallthru
      _
    // Predicated region
    $region26: #{dwa_forward.1} parent=1 // pred_check
      _
    $region27: #{dwa_forward.1} parent=1 // pred_check_branch
      %459 = sbr.rel (0) target = $region29
    $region28: #{dwa_forward.1} parent=1 // pred_region
      _
    $region29: #{dwa_forward.1} parent=1 // pred_fallthru
      _
    // Predicated region
    $region30: #{dwa_forward.1} parent=1 // pred_check
      _
    $region31: #{dwa_forward.1} parent=1 // pred_check_branch
      %461 = sbr.rel (0) target = $region33
    $region32: #{dwa_forward.1} parent=1 // pred_region
      _
    $region33: #{dwa_forward.1} parent=1 // pred_fallthru
      _
    // Predicated region
    $region34: #{dwa_forward.1} parent=1 // pred_check
      _
    $region35: #{dwa_forward.1} parent=1 // pred_check_branch
      %463 = sbr.rel (0) target = $region37
    $region36: #{dwa_forward.1} parent=1 // pred_region
      _
    $region37: #{dwa_forward.1} parent=1 // pred_fallthru
      _
    // Predicated region
    $region38: #{dwa_forward.1} parent=1 // pred_check
      _
    $region39: #{dwa_forward.1} parent=1 // pred_check_branch
      %465 = sbr.rel (0) target = $region41
    $region40: #{dwa_forward.1} parent=1 // pred_region
      _
    $region41: #{dwa_forward.1} parent=1 // pred_fallthru
      _
    %466 = vsyncpa [#allocation3], 1
    %467 = vsyncpa [#allocation4], 1

</llo_original>
